<compile_context>
chip_gen: v5e
topology: v5e:2x2
jax: 0.10.0
libtpu: 0.0.40
codegen_flags: <defaults>
</compile_context>

<pallas_src>
import functools

import jax
import jax.numpy as jnp
from jax.experimental import pallas as pl
from jax.experimental.pallas import tpu as pltpu


# ----------------------------------------------------------------------------
# Fused kernel: pool + MLP + sigmoid + scale on a VMEM-resident (nb, C, HW) slab
# ----------------------------------------------------------------------------
def _cam_fused_kernel(x_ref, w1_ref, b1_ref, w2_ref, b2_ref, o_ref, *, inv_hw, nb):
    w1 = w1_ref[...]          # (Cr, C)  f32
    b1 = b1_ref[...]          # (Cr, 1)  f32
    w2 = w2_ref[...]          # (C, Cr)  f32
    b2 = b2_ref[...]          # (C, 1)   f32

    def mlp(v):               # v: (C, 1) f32
        h = jnp.dot(w1, v, preferred_element_type=jnp.float32) + b1
        h = jnp.maximum(h, 0.0)
        return jnp.dot(w2, h, preferred_element_type=jnp.float32) + b2

    for b in range(nb):       # nb is small & static -> cheap unroll
        xb = x_ref[b]                                         # (C, HW), native dtype
        xf = xb.astype(jnp.float32)
        mx = jnp.max(xf, axis=-1, keepdims=True)              # (C, 1)
        av = jnp.sum(xf, axis=-1, keepdims=True) * inv_hw     # (C, 1)
        logits = mlp(mx) + mlp(av)                            # (C, 1)
        gate = 1.0 / (1.0 + jnp.exp(-logits))                 # sigmoid, f32
        # Multiply in x's native dtype (bf16 stays bf16 on v6e/v7x).
        o_ref[b] = (xb * gate.astype(xb.dtype)).astype(o_ref.dtype)


# ----------------------------------------------------------------------------
# Tiled path, pass 1: streaming global max/avg pool + MLP + sigmoid -> gate
# ----------------------------------------------------------------------------
def _cam_pool_gate_kernel(x_ref, w1_ref, b1_ref, w2_ref, b2_ref, gate_ref,
                          max_acc, sum_acc, *, inv_hw, hw, tile, acc_w, need_mask):
    t = pl.program_id(1)

    @pl.when(t == 0)
    def _init():
        max_acc[...] = jnp.full_like(max_acc, -jnp.inf)
        sum_acc[...] = jnp.zeros_like(sum_acc)

    x = x_ref[0].astype(jnp.float32)                          # (C, T)

    if need_mask:
        lane = jax.lax.broadcasted_iota(jnp.int32, x.shape, 1)
        valid = (t * tile + lane) < hw
        xm = jnp.where(valid, x, -jnp.inf)
        xs = jnp.where(valid, x, 0.0)
    else:
        xm, xs = x, x

    # Lane-wide accumulators: pure VPU per tile, single XLU reduce at finalize.
    m = max_acc[...]
    s = sum_acc[...]
    for i in range(tile // acc_w):
        sl = slice(i * acc_w, (i + 1) * acc_w)
        m = jnp.maximum(m, xm[:, sl])
        s = s + xs[:, sl]
    max_acc[...] = m
    sum_acc[...] = s

    @pl.when(t == pl.num_programs(1) - 1)
    def _finalize():
        w1 = w1_ref[...]
        b1 = b1_ref[...]
        w2 = w2_ref[...]
        b2 = b2_ref[...]

        def mlp(v):
            h = jnp.dot(w1, v, preferred_element_type=jnp.float32) + b1
            h = jnp.maximum(h, 0.0)
            return jnp.dot(w2, h, preferred_element_type=jnp.float32) + b2

        mx = jnp.max(max_acc[...], axis=-1, keepdims=True)    # (C, 1)
        av = jnp.sum(sum_acc[...], axis=-1, keepdims=True) * inv_hw
        logits = mlp(mx) + mlp(av)
        gate_ref[0] = (1.0 / (1.0 + jnp.exp(-logits))).astype(gate_ref.dtype)


# ----------------------------------------------------------------------------
# Tiled path, pass 2: out = gate * x
# ----------------------------------------------------------------------------
def _cam_scale_kernel(x_ref, gate_ref, o_ref):
    x = x_ref[...]                                # (1, C, T), native dtype
    g = gate_ref[...].astype(x.dtype)             # (1, C, 1)
    o_ref[...] = (x * g).astype(o_ref.dtype)


# ----------------------------------------------------------------------------
# Helpers / wrapper
# ----------------------------------------------------------------------------
def _choose_spatial_tile(hw, c, itemsize, budget):
    """Largest multiple-of-128 lane count whose (C, T) block stays <= budget."""
    if hw <= 128:
        return hw                                  # full dim -> always legal
    max_lanes = max(128, (budget // max(1, c * itemsize)) // 128 * 128)
    hw_padded = ((hw + 127) // 128) * 128
    return int(min(max_lanes, hw_padded))


def cam_forward(x, w1, b1, w2, b2, *, _force_tiled=False, _tile_override=None):
    """CAM.forward.

    x : (N, C, H, W)
    w1: (C//r, C)  b1: (C//r,)   (first Linear, PyTorch (out, in) layout)
    w2: (C, C//r)  b2: (C,)      (second Linear)
    returns (N, C, H, W)
    """
    N, C, H, W = x.shape
    Cr = w1.shape[0]
    HW = H * W
    inv_hw = 1.0 / float(HW)
    itemsize = x.dtype.itemsize

    # Free layout changes only.
    xf = x.reshape(N, C, HW)
    w1f = w1.astype(jnp.float32)
    w2f = w2.astype(jnp.float32)
    b1c = b1.reshape(Cr, 1).astype(jnp.float32)
    b2c = b2.reshape(C, 1).astype(jnp.float32)

    # Generation-aware budgets; vmem_limit kept safe for all generations.
    try:
        vmem_cap = getattr(pltpu.get_tpu_info(), "vmem_capacity_bytes",
                           64 * 1024 * 1024)
    except Exception:  # pragma: no cover - conservative fallback
        vmem_cap = 64 * 1024 * 1024
    if vmem_cap >= 100 * 1024 * 1024:              # v5e / v6e (128 MiB VMEM)
        slab_budget = 6 * 1024 * 1024
        tile_budget = 6 * 1024 * 1024
    else:                                          # v7x (64 MiB VMEM) / unknown
        slab_budget = 4 * 1024 * 1024
        tile_budget = int(2.5 * 1024 * 1024)
    vmem_limit = 40 * 1024 * 1024                  # < 64 MiB physical everywhere

    slab_bytes = C * HW * itemsize
    common_params = dict(vmem_limit_bytes=vmem_limit)

    # ---------------- Fused single-pass path (x read from HBM once) -----------
    if slab_bytes <= slab_budget and not _force_tiled:
        nb = 1
        for d in range(min(8, N), 0, -1):
            if N % d == 0 and d * slab_bytes <= slab_budget:
                nb = d
                break
        y = pl.pallas_call(
            functools.partial(_cam_fused_kernel, inv_hw=inv_hw, nb=nb),
            out_shape=jax.ShapeDtypeStruct((N, C, HW), x.dtype),
            grid_spec=pltpu.PrefetchScalarGridSpec(
                num_scalar_prefetch=0,
                grid=(N // nb,),
                in_specs=[
                    pl.BlockSpec((nb, C, HW), lambda b: (b, 0, 0)),
                    pl.BlockSpec((Cr, C), lambda b: (0, 0)),     # resident weights
                    pl.BlockSpec((Cr, 1), lambda b: (0, 0)),
                    pl.BlockSpec((C, Cr), lambda b: (0, 0)),
                    pl.BlockSpec((C, 1), lambda b: (0, 0)),
                ],
                out_specs=pl.BlockSpec((nb, C, HW), lambda b: (b, 0, 0)),
            ),
            compiler_params=pltpu.CompilerParams(
                dimension_semantics=("parallel",), **common_params),
        )(xf, w1f, b1c, w2f, b2c)
        return y.reshape(N, C, H, W)

    # ---------------- Tiled two-pass fallback (large slabs) -------------------
    T = _tile_override if _tile_override is not None else _choose_spatial_tile(
        HW, C, itemsize, tile_budget)
    n_tiles = pl.cdiv(HW, T)
    need_mask = (HW % T) != 0
    acc_w = min(T, 128)

    gate = pl.pallas_call(
        functools.partial(_cam_pool_gate_kernel, inv_hw=inv_hw, hw=HW,
                          tile=T, acc_w=acc_w, need_mask=need_mask),
        out_shape=jax.ShapeDtypeStruct((N, C, 1), jnp.float32),
        grid_spec=pltpu.PrefetchScalarGridSpec(
            num_scalar_prefetch=0,
            grid=(N, n_tiles),
            in_specs=[
                pl.BlockSpec((1, C, T), lambda b, t: (b, 0, t)),
                pl.BlockSpec((Cr, C), lambda b, t: (0, 0)),
                pl.BlockSpec((Cr, 1), lambda b, t: (0, 0)),
                pl.BlockSpec((C, Cr), lambda b, t: (0, 0)),
                pl.BlockSpec((C, 1), lambda b, t: (0, 0)),
            ],
            out_specs=pl.BlockSpec((1, C, 1), lambda b, t: (b, 0, 0)),
            scratch_shapes=[pltpu.VMEM((C, acc_w), jnp.float32),
                            pltpu.VMEM((C, acc_w), jnp.float32)],
        ),
        compiler_params=pltpu.CompilerParams(
            dimension_semantics=("parallel", "arbitrary"), **common_params),
    )(xf, w1f, b1c, w2f, b2c)

    y = pl.pallas_call(
        _cam_scale_kernel,
        out_shape=jax.ShapeDtypeStruct((N, C, HW), x.dtype),
        grid_spec=pltpu.PrefetchScalarGridSpec(
            num_scalar_prefetch=0,
            grid=(N, n_tiles),
            in_specs=[
                pl.BlockSpec((1, C, T), lambda b, t: (b, 0, t)),
                pl.BlockSpec((1, C, 1), lambda b, t: (b, 0, 0)),
            ],
            out_specs=pl.BlockSpec((1, C, T), lambda b, t: (b, 0, t)),
        ),
        compiler_params=pltpu.CompilerParams(
            dimension_semantics=("parallel", "parallel"), **common_params),
    )(xf, gate)
    return y.reshape(N, C, H, W)


# ----------------------------------------------------------------------------
# Demo / self-test
# ----------------------------------------------------------------------------
def _cam_reference(x, w1, b1, w2, b2):
    mx = jnp.max(x, axis=(2, 3))
    av = jnp.mean(x, axis=(2, 3))

    def mlp(v):
        return jnp.maximum(v @ w1.T + b1, 0.0) @ w2.T + b2

    gate = jax.nn.sigmoid(mlp(mx) + mlp(av))
    return gate[:, :, None, None] * x


if __name__ == "__main__":
    # CAM(channels=32, r=4)
    N, C, r = 2, 32, 4
    Cr = C // r
    key = jax.random.PRNGKey(0)
    k1, k2, k3, k4, kx1, kx2 = jax.random.split(key, 6)
    w1 = jax.random.normal(k1, (Cr, C), dtype=jnp.float32) * 0.1
    b1 = jax.random.normal(k2, (Cr,), dtype=jnp.float32) * 0.1
    w2 = jax.random.normal(k3, (C, Cr), dtype=jnp.float32) * 0.1
    b2 = jax.random.normal(k4, (C,), dtype=jnp.float32) * 0.1

    # 1) Fused single-pass path (slab fits in VMEM), H*W multiple of 128.
    x1 = jax.random.normal(kx1, (N, C, 16, 16), dtype=jnp.float32)
    out1 = jax.block_until_ready(cam_forward(x1, w1, b1, w2, b2))
    ref1 = _cam_reference(x1, w1, b1, w2, b2)
    assert out1.shape == x1.shape
    assert jnp.allclose(out1, ref1, atol=1e-4, rtol=1e-4)

    # 2) Tiled two-pass path with masked remainder tiles (H*W = 400, T = 128).
    x2 = jax.random.normal(kx2, (N, C, 20, 20), dtype=jnp.float32)
    out2 = jax.block_until_ready(
        cam_forward(x2, w1, b1, w2, b2, _force_tiled=True, _tile_override=128))
    ref2 = _cam_reference(x2, w1, b1, w2, b2)
    assert out2.shape == x2.shape
    assert jnp.allclose(out2, ref2, atol=1e-4, rtol=1e-4)

    print("KERNEL_OK")
</pallas_src>

<mosaic_0001>
module attributes {stable_mosaic.version = 11 : i64} {
  func.func @_cam_fused_kernel(%arg0: i32, %arg1: memref<2x32x256xf32, #tpu.memory_space<vmem>>, %arg2: memref<8x32xf32, #tpu.memory_space<vmem>>, %arg3: memref<8x1xf32, #tpu.memory_space<vmem>>, %arg4: memref<32x8xf32, #tpu.memory_space<vmem>>, %arg5: memref<32x1xf32, #tpu.memory_space<vmem>>, %arg6: memref<2x32x256xf32, #tpu.memory_space<vmem>>) attributes {dimension_semantics = [#tpu.dimension_semantics<parallel>], iteration_bounds = array<i64: 1>, scalar_prefetch = 0 : i64, scratch_operands = 0 : i64, tpu.core_type = #tpu.core_type<tc>, window_params = [{transform_indices = @transform_0, window_bounds = array<i64: 2, 32, 256>}, {pipeline_mode = #tpu.pipeline_mode<synchronous>, transform_indices = @transform_1, window_bounds = array<i64: 8, 32>}, {pipeline_mode = #tpu.pipeline_mode<synchronous>, transform_indices = @transform_2, window_bounds = array<i64: 8, 1>}, {pipeline_mode = #tpu.pipeline_mode<synchronous>, transform_indices = @transform_3, window_bounds = array<i64: 32, 8>}, {pipeline_mode = #tpu.pipeline_mode<synchronous>, transform_indices = @transform_4, window_bounds = array<i64: 32, 1>}, {transform_indices = @transform_5, window_bounds = array<i64: 2, 32, 256>}]} {
    %c0 = arith.constant 0 : index
    %c0_0 = arith.constant 0 : index
    %0 = vector.load %arg2[%c0, %c0_0] : memref<8x32xf32, #tpu.memory_space<vmem>>, vector<8x32xf32>
    %c0_1 = arith.constant 0 : index
    %c0_2 = arith.constant 0 : index
    %1 = vector.load %arg3[%c0_1, %c0_2] : memref<8x1xf32, #tpu.memory_space<vmem>>, vector<8x1xf32>
    %c0_3 = arith.constant 0 : index
    %c0_4 = arith.constant 0 : index
    %2 = vector.load %arg4[%c0_3, %c0_4] : memref<32x8xf32, #tpu.memory_space<vmem>>, vector<32x8xf32>
    %c0_5 = arith.constant 0 : index
    %c0_6 = arith.constant 0 : index
    %3 = vector.load %arg5[%c0_5, %c0_6] : memref<32x1xf32, #tpu.memory_space<vmem>>, vector<32x1xf32>
    %c0_7 = arith.constant 0 : index
    %c0_8 = arith.constant 0 : index
    %c0_9 = arith.constant 0 : index
    %4 = vector.load %arg1[%c0_7, %c0_8, %c0_9] : memref<2x32x256xf32, #tpu.memory_space<vmem>>, vector<1x32x256xf32>
    %5 = vector.shape_cast %4 : vector<1x32x256xf32> to vector<32x256xf32>
    %cst = arith.constant dense<0xFF800000> : vector<32xf32>
    %6 = vector.multi_reduction <maximumf>, %5, %cst [1] : vector<32x256xf32> to vector<32xf32>
    %7 = vector.shape_cast %6 : vector<32xf32> to vector<32x1xf32>
    %cst_10 = arith.constant dense<0.000000e+00> : vector<32xf32>
    %8 = vector.multi_reduction <add>, %5, %cst_10 [1] : vector<32x256xf32> to vector<32xf32>
    %9 = vector.shape_cast %8 : vector<32xf32> to vector<32x1xf32>
    %cst_11 = arith.constant 3.906250e-03 : f32
    %10 = vector.broadcast %cst_11 : f32 to vector<32x1xf32>
    %11 = arith.mulf %9, %10 : vector<32x1xf32>
    %cst_12 = arith.constant dense<0.000000e+00> : vector<8x1xf32>
    %12 = tpu.matmul %0, %7, %cst_12 {dimension_numbers = #tpu.dot_dimension_numbers<[1], [0], [0], [1], [0, 0, 1, 1], [], []>} : vector<8x32xf32>, vector<32x1xf32>, vector<8x1xf32> -> vector<8x1xf32>
    %13 = arith.addf %12, %1 : vector<8x1xf32>
    %cst_13 = arith.constant 0.000000e+00 : f32
    %14 = vector.broadcast %cst_13 : f32 to vector<8x1xf32>
    %15 = arith.maximumf %13, %14 : vector<8x1xf32>
    %cst_14 = arith.constant dense<0.000000e+00> : vector<32x1xf32>
    %16 = tpu.matmul %2, %15, %cst_14 {dimension_numbers = #tpu.dot_dimension_numbers<[1], [0], [0], [1], [0, 0, 1, 1], [], []>} : vector<32x8xf32>, vector<8x1xf32>, vector<32x1xf32> -> vector<32x1xf32>
    %17 = arith.addf %16, %3 : vector<32x1xf32>
    %cst_15 = arith.constant dense<0.000000e+00> : vector<8x1xf32>
    %18 = tpu.matmul %0, %11, %cst_15 {dimension_numbers = #tpu.dot_dimension_numbers<[1], [0], [0], [1], [0, 0, 1, 1], [], []>} : vector<8x32xf32>, vector<32x1xf32>, vector<8x1xf32> -> vector<8x1xf32>
    %19 = arith.addf %18, %1 : vector<8x1xf32>
    %cst_16 = arith.constant 0.000000e+00 : f32
    %20 = vector.broadcast %cst_16 : f32 to vector<8x1xf32>
    %21 = arith.maximumf %19, %20 : vector<8x1xf32>
    %cst_17 = arith.constant dense<0.000000e+00> : vector<32x1xf32>
    %22 = tpu.matmul %2, %21, %cst_17 {dimension_numbers = #tpu.dot_dimension_numbers<[1], [0], [0], [1], [0, 0, 1, 1], [], []>} : vector<32x8xf32>, vector<8x1xf32>, vector<32x1xf32> -> vector<32x1xf32>
    %23 = arith.addf %22, %3 : vector<32x1xf32>
    %24 = arith.addf %17, %23 : vector<32x1xf32>
    %cst_18 = arith.constant 0.000000e+00 : f32
    %25 = vector.broadcast %cst_18 : f32 to vector<32x1xf32>
    %26 = arith.subf %25, %24 : vector<32x1xf32>
    %27 = math.exp %26 : vector<32x1xf32>
    %cst_19 = arith.constant 1.000000e+00 : f32
    %28 = vector.broadcast %cst_19 : f32 to vector<32x1xf32>
    %29 = arith.addf %28, %27 : vector<32x1xf32>
    %cst_20 = arith.constant 1.000000e+00 : f32
    %30 = vector.broadcast %cst_20 : f32 to vector<32x1xf32>
    %31 = arith.divf %30, %29 : vector<32x1xf32>
    %32 = vector.broadcast %31 : vector<32x1xf32> to vector<32x256xf32>
    %33 = arith.mulf %5, %32 : vector<32x256xf32>
    %c0_21 = arith.constant 0 : index
    %c0_22 = arith.constant 0 : index
    %c0_23 = arith.constant 0 : index
    %34 = vector.load %arg6[%c0_21, %c0_22, %c0_23] : memref<2x32x256xf32, #tpu.memory_space<vmem>>, vector<1x32x256xf32>
    %35 = vector.shape_cast %34 : vector<1x32x256xf32> to vector<32x256xf32>
    %36 = vector.shape_cast %33 : vector<32x256xf32> to vector<1x32x256xf32>
    tpu.vector_store %arg6[%c0_21, %c0_22, %c0_23], %36 {strides = array<i32>} : memref<2x32x256xf32, #tpu.memory_space<vmem>>, vector<1x32x256xf32>,
    %c1 = arith.constant 1 : index
    %c0_24 = arith.constant 0 : index
    %c0_25 = arith.constant 0 : index
    %37 = vector.load %arg1[%c1, %c0_24, %c0_25] : memref<2x32x256xf32, #tpu.memory_space<vmem>>, vector<1x32x256xf32>
    %38 = vector.shape_cast %37 : vector<1x32x256xf32> to vector<32x256xf32>
    %cst_26 = arith.constant dense<0xFF800000> : vector<32xf32>
    %39 = vector.multi_reduction <maximumf>, %38, %cst_26 [1] : vector<32x256xf32> to vector<32xf32>
    %40 = vector.shape_cast %39 : vector<32xf32> to vector<32x1xf32>
    %cst_27 = arith.constant dense<0.000000e+00> : vector<32xf32>
    %41 = vector.multi_reduction <add>, %38, %cst_27 [1] : vector<32x256xf32> to vector<32xf32>
    %42 = vector.shape_cast %41 : vector<32xf32> to vector<32x1xf32>
    %cst_28 = arith.constant 3.906250e-03 : f32
    %43 = vector.broadcast %cst_28 : f32 to vector<32x1xf32>
    %44 = arith.mulf %42, %43 : vector<32x1xf32>
    %cst_29 = arith.constant dense<0.000000e+00> : vector<8x1xf32>
    %45 = tpu.matmul %0, %40, %cst_29 {dimension_numbers = #tpu.dot_dimension_numbers<[1], [0], [0], [1], [0, 0, 1, 1], [], []>} : vector<8x32xf32>, vector<32x1xf32>, vector<8x1xf32> -> vector<8x1xf32>
    %46 = arith.addf %45, %1 : vector<8x1xf32>
    %cst_30 = arith.constant 0.000000e+00 : f32
    %47 = vector.broadcast %cst_30 : f32 to vector<8x1xf32>
    %48 = arith.maximumf %46, %47 : vector<8x1xf32>
    %cst_31 = arith.constant dense<0.000000e+00> : vector<32x1xf32>
    %49 = tpu.matmul %2, %48, %cst_31 {dimension_numbers = #tpu.dot_dimension_numbers<[1], [0], [0], [1], [0, 0, 1, 1], [], []>} : vector<32x8xf32>, vector<8x1xf32>, vector<32x1xf32> -> vector<32x1xf32>
    %50 = arith.addf %49, %3 : vector<32x1xf32>
    %cst_32 = arith.constant dense<0.000000e+00> : vector<8x1xf32>
    %51 = tpu.matmul %0, %44, %cst_32 {dimension_numbers = #tpu.dot_dimension_numbers<[1], [0], [0], [1], [0, 0, 1, 1], [], []>} : vector<8x32xf32>, vector<32x1xf32>, vector<8x1xf32> -> vector<8x1xf32>
    %52 = arith.addf %51, %1 : vector<8x1xf32>
    %cst_33 = arith.constant 0.000000e+00 : f32
    %53 = vector.broadcast %cst_33 : f32 to vector<8x1xf32>
    %54 = arith.maximumf %52, %53 : vector<8x1xf32>
    %cst_34 = arith.constant dense<0.000000e+00> : vector<32x1xf32>
    %55 = tpu.matmul %2, %54, %cst_34 {dimension_numbers = #tpu.dot_dimension_numbers<[1], [0], [0], [1], [0, 0, 1, 1], [], []>} : vector<32x8xf32>, vector<8x1xf32>, vector<32x1xf32> -> vector<32x1xf32>
    %56 = arith.addf %55, %3 : vector<32x1xf32>
    %57 = arith.addf %50, %56 : vector<32x1xf32>
    %cst_35 = arith.constant 0.000000e+00 : f32
    %58 = vector.broadcast %cst_35 : f32 to vector<32x1xf32>
    %59 = arith.subf %58, %57 : vector<32x1xf32>
    %60 = math.exp %59 : vector<32x1xf32>
    %cst_36 = arith.constant 1.000000e+00 : f32
    %61 = vector.broadcast %cst_36 : f32 to vector<32x1xf32>
    %62 = arith.addf %61, %60 : vector<32x1xf32>
    %cst_37 = arith.constant 1.000000e+00 : f32
    %63 = vector.broadcast %cst_37 : f32 to vector<32x1xf32>
    %64 = arith.divf %63, %62 : vector<32x1xf32>
    %65 = vector.broadcast %64 : vector<32x1xf32> to vector<32x256xf32>
    %66 = arith.mulf %38, %65 : vector<32x256xf32>
    %c1_38 = arith.constant 1 : index
    %c0_39 = arith.constant 0 : index
    %c0_40 = arith.constant 0 : index
    %67 = vector.load %arg6[%c1_38, %c0_39, %c0_40] : memref<2x32x256xf32, #tpu.memory_space<vmem>>, vector<1x32x256xf32>
    %68 = vector.shape_cast %67 : vector<1x32x256xf32> to vector<32x256xf32>
    %69 = vector.shape_cast %66 : vector<32x256xf32> to vector<1x32x256xf32>
    tpu.vector_store %arg6[%c1_38, %c0_39, %c0_40], %69 {strides = array<i32>} : memref<2x32x256xf32, #tpu.memory_space<vmem>>, vector<1x32x256xf32>,
    return
  }
  func.func @transform_0(%arg0: i32) -> (i32, i32, i32) {
    %c0_i32 = arith.constant 0 : i32
    %c0_i32_0 = arith.constant 0 : i32
    %c0_i32_1 = arith.constant 0 : i32
    return %arg0, %c0_i32, %c0_i32_0 : i32, i32, i32
  }
  func.func @transform_1(%arg0: i32) -> (i32, i32) {
    %c0_i32 = arith.constant 0 : i32
    %c0_i32_0 = arith.constant 0 : i32
    %c0_i32_1 = arith.constant 0 : i32
    return %c0_i32, %c0_i32_0 : i32, i32
  }
  func.func @transform_2(%arg0: i32) -> (i32, i32) {
    %c0_i32 = arith.constant 0 : i32
    %c0_i32_0 = arith.constant 0 : i32
    %c0_i32_1 = arith.constant 0 : i32
    return %c0_i32, %c0_i32_0 : i32, i32
  }
  func.func @transform_3(%arg0: i32) -> (i32, i32) {
    %c0_i32 = arith.constant 0 : i32
    %c0_i32_0 = arith.constant 0 : i32
    %c0_i32_1 = arith.constant 0 : i32
    return %c0_i32, %c0_i32_0 : i32, i32
  }
  func.func @transform_4(%arg0: i32) -> (i32, i32) {
    %c0_i32 = arith.constant 0 : i32
    %c0_i32_0 = arith.constant 0 : i32
    %c0_i32_1 = arith.constant 0 : i32
    return %c0_i32, %c0_i32_0 : i32, i32
  }
  func.func @transform_5(%arg0: i32) -> (i32, i32, i32) {
    %c0_i32 = arith.constant 0 : i32
    %c0_i32_0 = arith.constant 0 : i32
    %c0_i32_1 = arith.constant 0 : i32
    return %arg0, %c0_i32, %c0_i32_0 : i32, i32, i32
  }
}

</mosaic_0001>

<llo_original>
// kernel: tpu_custom_call.1
$region0: #{tpu_custom_call.1}
  #allocation0 [shape = 'u32[]', space=smem, size = 0x4, offset = 0x4, fixed_abs, tag = 'smem constant byte address 0x4 - core index']
  #allocation1 [shape = 'u32[72,128]{1,0:T(1,128)}', space=vmem, size = 0x9000, scoped, tag = 'internal scratch']
  %s0 = inlined_call_operand.hbm [shape: f32[2,32,256], index: 0, kind: input, shape index: {}]
  %s1 = inlined_call_operand.vmem [shape: f32[8,32], index: 1, kind: input, shape index: {}]
  %s2 = inlined_call_operand.vmem [shape: f32[8,1], index: 2, kind: input, shape index: {}]
  %s3 = inlined_call_operand.vmem [shape: f32[32,8], index: 3, kind: input, shape index: {}]
  %s4 = inlined_call_operand.vmem [shape: f32[32,1], index: 4, kind: input, shape index: {}]
  %s5 = inlined_call_operand.hbm [shape: f32[2,32,256], index: 5, kind: output, shape index: {}]
  %s6 = sld [smem:[#allocation0]]
  $region34: #{tpu_custom_call.1} parent=0
    _
  %s8 = ssub.s32 1, %s6
  %s9 = scalar_select 0, %s8, %s6
  $region1: #{tpu_custom_call.1} parent=0
    #allocation2 [shape = 'u8[65536]{0}', space=vmem, size = 0x10000, scoped, tag = 'input window, operand 0, single buffered']
    #allocation3 [shape = 's32[1]{0}', space=sflag, size = 0x4, scoped, tag = 'scoped memory for tpu_custom_call.1']
    #allocation4 [shape = 's32[1]{0}', space=sflag, size = 0x4, scoped, tag = 'scoped memory for tpu_custom_call.1']
    #allocation5 [shape = 'u8[65536]{0}', space=vmem, size = 0x10000, scoped, tag = 'output window, operand 0, single buffered']
    %10 = vsyncpa [#allocation3], 0
    %11 = vsyncpa [#allocation4], 0
    // Predicated region
    $region2: #{tpu_custom_call.1} parent=1 // pred_check
      _
    $region3: #{tpu_custom_call.1} parent=1 // pred_check_branch
      %13 = sbr.rel (0) target = $region5
    $region4: #{tpu_custom_call.1} parent=1 // pred_region
      %15 = vsyncadd [#allocation3], 0
      %s16 = sshll.u32 %s0, 4
      %s17 = int_to_ptr.hbm [resolvable:$true] %s16
      %s18 = sshll.u32 [#allocation2], 4
      %s19 = int_to_ptr.vmem [resolvable:$true] %s18
      %24 = dma.hbm_to_vmem [thread:$0]  %s17, 2048, %s19, [#allocation3], 256, 256, 16
    $region5: #{tpu_custom_call.1} parent=1 // pred_fallthru
      _
    // Predicated region
    $region6: #{tpu_custom_call.1} parent=1 // pred_check
      _
    $region7: #{tpu_custom_call.1} parent=1 // pred_check_branch
      %26 = sbr.rel (0) target = $region9
    $region8: #{tpu_custom_call.1} parent=1 // pred_region
      _
    $region9: #{tpu_custom_call.1} parent=1 // pred_fallthru
      _
    // Predicated region
    $region10: #{tpu_custom_call.1} parent=1 // pred_check
      _
    $region11: #{tpu_custom_call.1} parent=1 // pred_check_branch
      %28 = sbr.rel (0) target = $region13
    $region12: #{tpu_custom_call.1} parent=1 // pred_region
      _
    $region13: #{tpu_custom_call.1} parent=1 // pred_fallthru
      _
    // Predicated region
    $region14: #{tpu_custom_call.1} parent=1 // pred_check
      _
    $region15: #{tpu_custom_call.1} parent=1 // pred_check_branch
      %30 = sbr.rel (0) target = $region17
    $region16: #{tpu_custom_call.1} parent=1 // pred_region
      _
    $region17: #{tpu_custom_call.1} parent=1 // pred_fallthru
      _
    // Predicated region
    $region18: #{tpu_custom_call.1} parent=1 // pred_check
      _
    $region19: #{tpu_custom_call.1} parent=1 // pred_check_branch
      %32 = sbr.rel (0) target = $region21
    $region20: #{tpu_custom_call.1} parent=1 // pred_region
      _
    $region21: #{tpu_custom_call.1} parent=1 // pred_fallthru
      _
    // Predicated region
    $region22: #{tpu_custom_call.1} parent=1 // pred_check
      _
    $region23: #{tpu_custom_call.1} parent=1 // pred_check_branch
      %34 = sbr.rel (0) target = $region25
    $region24: #{tpu_custom_call.1} parent=1 // pred_region
      %36 = dma.done [#allocation3], 2048
    $region25: #{tpu_custom_call.1} parent=1 // pred_fallthru
      _
    %v37 = vld [vmem:[%s1] sm:$0xff]
    %v38 = vld [vmem:[%s2] sm:$0xff]
    %v39 = vld [vmem:[%s3] sm:$0xff]
    %v40 = vld [vmem:[%s3 + $0x8] sm:$0xff]
    %v41 = vld [vmem:[%s3 + $0x10] sm:$0xff]
    %v42 = vld [vmem:[%s3 + $0x18] sm:$0xff]
    %v43 = vld [vmem:[%s4] sm:$0xff]
    %v44 = vld [vmem:[%s4 + $0x8] sm:$0xff]
    %v45 = vld [vmem:[%s4 + $0x10] sm:$0xff]
    %v46 = vld [vmem:[%s4 + $0x18] sm:$0xff]
    %v47 = vld [vmem:[#allocation2] sm:$0xff]
    %v48 = vld [vmem:[#allocation2 + $0x8] sm:$0xff]
    %v49 = vld [vmem:[#allocation2 + $0x10] sm:$0xff]
    %v50 = vld [vmem:[#allocation2 + $0x18] sm:$0xff]
    %v51 = vld [vmem:[#allocation2 + $0x20] sm:$0xff]
    %v52 = vld [vmem:[#allocation2 + $0x28] sm:$0xff]
    %v53 = vld [vmem:[#allocation2 + $0x30] sm:$0xff]
    %v54 = vld [vmem:[#allocation2 + $0x38] sm:$0xff]
    %v55 = vmax.f32 %v47, %v48
    %56 = vmax.xlane.f32.xlu0 %v55
    %v57 = vpop.xlane.xlu0 %56
    %v58 = vmax.f32 %v49, %v50
    %59 = vmax.xlane.f32.xlu0 %v58
    %v60 = vpop.xlane.xlu0 %59
    %v61 = vmax.f32 %v51, %v52
    %62 = vmax.xlane.f32.xlu0 %v61
    %v63 = vpop.xlane.xlu0 %62
    %v64 = vmax.f32 %v53, %v54
    %65 = vmax.xlane.f32.xlu0 %v64
    %v66 = vpop.xlane.xlu0 %65
    %v67 = vadd.f32 %v47, %v48
    %68 = vadd.xlane.f32.xlu0 %v67
    %v69 = vpop.xlane.xlu0 %68
    %v70 = vadd.f32 %v49, %v50
    %71 = vadd.xlane.f32.xlu0 %v70
    %v72 = vpop.xlane.xlu0 %71
    %v73 = vadd.f32 %v51, %v52
    %74 = vadd.xlane.f32.xlu0 %v73
    %v75 = vpop.xlane.xlu0 %74
    %v76 = vadd.f32 %v53, %v54
    %77 = vadd.xlane.f32.xlu0 %v76
    %v78 = vpop.xlane.xlu0 %77
    %v79 = vmul.f32 %v69, 0.00390625
    %v80 = vmul.f32 %v72, 0.00390625
    %v81 = vmul.f32 %v75, 0.00390625
    %v82 = vmul.f32 %v78, 0.00390625
    %vm83 = vcmask 261120
    %v85 = vsel %vm83, %v37, 0
    %87 = vmatpush.msra.mxu0 0.0
    %88 = vmatpush.msra.mxu0 0.0
    %89 = vmatpush.msra.mxu0 0.0
    %90 = vmatpush.msra.mxu0 0.0
    %91 = vmatpush.msra.mxu0 0.0
    %92 = vmatpush.msra.mxu0 0.0
    %93 = vmatpush.msra.mxu0 0.0
    %94 = vmatpush.msra.mxu0 0.0
    %95 = vmatpush.msra.mxu0 0.0
    %96 = vmatpush.msra.mxu0 0.0
    %97 = vmatpush.msra.mxu0 0.0
    %98 = vmatpush.msra.mxu0 0.0
    %99 = vmatpush.msra.mxu0 %v66
    %100 = vmatpush.msra.mxu0 %v63
    %101 = vmatpush.msra.mxu0 %v60
    %102 = vmatpush.msra.mxu0 %v57
    %103 = vmatmul.f32.gmra.mxu0 %v85
    %v104 = vpop.f32.mrf.mxu0
    %v105 = vadd.f32 %v38, %v104
    %106 = vdwg.mxu0
    %v107 = vmax.f32 %v105, 0.0
    %vm108 = vcmask 64512
    %v110 = vsel %vm108, %v39, 0
    %v113 = vsel %vm108, %v40, 0
    %v116 = vsel %vm108, %v41, 0
    %v119 = vsel %vm108, %v42, 0
    %121 = vmatpush.msra.mxu0 0.0
    %122 = vmatpush.msra.mxu0 0.0
    %123 = vmatpush.msra.mxu0 0.0
    %124 = vmatpush.msra.mxu0 0.0
    %125 = vmatpush.msra.mxu0 0.0
    %126 = vmatpush.msra.mxu0 0.0
    %127 = vmatpush.msra.mxu0 0.0
    %128 = vmatpush.msra.mxu0 0.0
    %129 = vmatpush.msra.mxu0 0.0
    %130 = vmatpush.msra.mxu0 0.0
    %131 = vmatpush.msra.mxu0 0.0
    %132 = vmatpush.msra.mxu0 0.0
    %133 = vmatpush.msra.mxu0 0.0
    %134 = vmatpush.msra.mxu0 0.0
    %135 = vmatpush.msra.mxu0 0.0
    %136 = vmatpush.msra.mxu0 %v107
    %137 = vmatmul.f32.gmra.mxu0 %v110
    %v138 = vpop.f32.mrf.mxu0
    %v139 = vadd.f32 %v43, %v138
    %140 = vmatmul.f32.gmra.mxu0 %v113
    %v141 = vpop.f32.mrf.mxu0
    %v142 = vadd.f32 %v44, %v141
    %143 = vmatmul.f32.gmra.mxu0 %v116
    %v144 = vpop.f32.mrf.mxu0
    %v145 = vadd.f32 %v45, %v144
    %146 = vmatmul.f32.gmra.mxu0 %v119
    %v147 = vpop.f32.mrf.mxu0
    %v148 = vadd.f32 %v46, %v147
    %149 = vdwg.mxu0
    %150 = vmatpush.msra.mxu0 0.0
    %151 = vmatpush.msra.mxu0 0.0
    %152 = vmatpush.msra.mxu0 0.0
    %153 = vmatpush.msra.mxu0 0.0
    %154 = vmatpush.msra.mxu0 0.0
    %155 = vmatpush.msra.mxu0 0.0
    %156 = vmatpush.msra.mxu0 0.0
    %157 = vmatpush.msra.mxu0 0.0
    %158 = vmatpush.msra.mxu0 0.0
    %159 = vmatpush.msra.mxu0 0.0
    %160 = vmatpush.msra.mxu0 0.0
    %161 = vmatpush.msra.mxu0 0.0
    %162 = vmatpush.msra.mxu0 %v82
    %163 = vmatpush.msra.mxu0 %v81
    %164 = vmatpush.msra.mxu0 %v80
    %165 = vmatpush.msra.mxu0 %v79
    %166 = vmatmul.f32.gmra.mxu0 %v85
    %v167 = vpop.f32.mrf.mxu0
    %v168 = vadd.f32 %v38, %v167
    %169 = vdwg.mxu0
    %v170 = vmax.f32 %v168, 0.0
    %171 = vmatpush.msra.mxu0 0.0
    %172 = vmatpush.msra.mxu0 0.0
    %173 = vmatpush.msra.mxu0 0.0
    %174 = vmatpush.msra.mxu0 0.0
    %175 = vmatpush.msra.mxu0 0.0
    %176 = vmatpush.msra.mxu0 0.0
    %177 = vmatpush.msra.mxu0 0.0
    %178 = vmatpush.msra.mxu0 0.0
    %179 = vmatpush.msra.mxu0 0.0
    %180 = vmatpush.msra.mxu0 0.0
    %181 = vmatpush.msra.mxu0 0.0
    %182 = vmatpush.msra.mxu0 0.0
    %183 = vmatpush.msra.mxu0 0.0
    %184 = vmatpush.msra.mxu0 0.0
    %185 = vmatpush.msra.mxu0 0.0
    %186 = vmatpush.msra.mxu0 %v170
    %187 = vmatmul.f32.gmra.mxu0 %v110
    %v188 = vpop.f32.mrf.mxu0
    %v189 = vadd.f32 %v43, %v188
    %190 = vmatmul.f32.gmra.mxu0 %v113
    %v191 = vpop.f32.mrf.mxu0
    %v192 = vadd.f32 %v44, %v191
    %193 = vmatmul.f32.gmra.mxu0 %v116
    %v194 = vpop.f32.mrf.mxu0
    %v195 = vadd.f32 %v45, %v194
    %196 = vmatmul.f32.gmra.mxu0 %v119
    %v197 = vpop.f32.mrf.mxu0
    %v198 = vadd.f32 %v46, %v197
    %199 = vdwg.mxu0
    %v200 = vadd.f32 %v139, %v189
    %v201 = vadd.f32 %v142, %v192
    %v202 = vadd.f32 %v145, %v195
    %v203 = vadd.f32 %v148, %v198
    %v204 = vsub.f32 0.0, %v200
    %v205 = vsub.f32 0.0, %v201
    %v206 = vsub.f32 0.0, %v202
    %v207 = vsub.f32 0.0, %v203
    %v208 = vmul.f32 %v204, 1.442695
    %v209 = vpow.pop %v208
    %v210 = vmul.f32 %v205, 1.442695
    %v211 = vpow.pop %v210
    %v212 = vmul.f32 %v206, 1.442695
    %v213 = vpow.pop %v212
    %v214 = vmul.f32 %v207, 1.442695
    %v215 = vpow.pop %v214
    %v216 = vadd.f32 %v209, 1.0
    %v217 = vadd.f32 %v211, 1.0
    %v218 = vadd.f32 %v213, 1.0
    %v219 = vadd.f32 %v215, 1.0
    %v220 = vrcp.pop %v216
    %v221 = vmul.f32 %v216, %v220
    %v222 = vsub.f32 1.0, %v221
    %v223 = vmul.f32 %v220, %v222
    %v224 = vadd.f32 %v220, %v223
    %vm225 = vweird.f32 %v216
    %vm226 = vweird.f32 %v220
    %vm227 = vmor %vm225, %vm226
    %v228 = vsel %vm227, %v220, %v224
    %v229 = vand.u32 2147483647, %v216
    %vm230 = vcmp.eq.f32.partialorder %v229, 8.507059e+37
    %v231 = vand.u32 %v216, 2147483648
    %v232 = vor.u32 1.1754944e-38, %v231
    %v233 = vsel %vm230, %v232, %v228
    %v234 = vmul.f32 1.0, %v233
    %v235 = vrcp.pop %v217
    %v236 = vmul.f32 %v217, %v235
    %v237 = vsub.f32 1.0, %v236
    %v238 = vmul.f32 %v235, %v237
    %v239 = vadd.f32 %v235, %v238
    %vm240 = vweird.f32 %v217
    %vm241 = vweird.f32 %v235
    %vm242 = vmor %vm240, %vm241
    %v243 = vsel %vm242, %v235, %v239
    %v244 = vand.u32 2147483647, %v217
    %vm245 = vcmp.eq.f32.partialorder %v244, 8.507059e+37
    %v246 = vand.u32 %v217, 2147483648
    %v247 = vor.u32 1.1754944e-38, %v246
    %v248 = vsel %vm245, %v247, %v243
    %v249 = vmul.f32 1.0, %v248
    %v250 = vrcp.pop %v218
    %v251 = vmul.f32 %v218, %v250
    %v252 = vsub.f32 1.0, %v251
    %v253 = vmul.f32 %v250, %v252
    %v254 = vadd.f32 %v250, %v253
    %vm255 = vweird.f32 %v218
    %vm256 = vweird.f32 %v250
    %vm257 = vmor %vm255, %vm256
    %v258 = vsel %vm257, %v250, %v254
    %v259 = vand.u32 2147483647, %v218
    %vm260 = vcmp.eq.f32.partialorder %v259, 8.507059e+37
    %v261 = vand.u32 %v218, 2147483648
    %v262 = vor.u32 1.1754944e-38, %v261
    %v263 = vsel %vm260, %v262, %v258
    %v264 = vmul.f32 1.0, %v263
    %v265 = vrcp.pop %v219
    %v266 = vmul.f32 %v219, %v265
    %v267 = vsub.f32 1.0, %v266
    %v268 = vmul.f32 %v265, %v267
    %v269 = vadd.f32 %v265, %v268
    %vm270 = vweird.f32 %v219
    %vm271 = vweird.f32 %v265
    %vm272 = vmor %vm270, %vm271
    %v273 = vsel %vm272, %v265, %v269
    %v274 = vand.u32 2147483647, %v219
    %vm275 = vcmp.eq.f32.partialorder %v274, 8.507059e+37
    %v276 = vand.u32 %v219, 2147483648
    %v277 = vor.u32 1.1754944e-38, %v276
    %v278 = vsel %vm275, %v277, %v273
    %v279 = vmul.f32 1.0, %v278
    %281 = vset.pattern.permute.xlu0 0
    %282 = vperm.xlu0 %281, %v234
    %v283 = vpop.permute.xlu0 %282
    %286 = vset.pattern.permute.xlu0 0
    %287 = vperm.xlu0 %286, %v249
    %v288 = vpop.permute.xlu0 %287
    %291 = vset.pattern.permute.xlu0 0
    %292 = vperm.xlu0 %291, %v264
    %v293 = vpop.permute.xlu0 %292
    %296 = vset.pattern.permute.xlu0 0
    %297 = vperm.xlu0 %296, %v279
    %v298 = vpop.permute.xlu0 %297
    %v300 = vmul.f32 %v47, %v283
    %v301 = vmul.f32 %v48, %v283
    %v302 = vmul.f32 %v49, %v288
    %v303 = vmul.f32 %v50, %v288
    %v304 = vmul.f32 %v51, %v293
    %v305 = vmul.f32 %v52, %v293
    %v306 = vmul.f32 %v53, %v298
    %v307 = vmul.f32 %v54, %v298
    %308 = vst [vmem:[#allocation5] sm:$0xff] %v300
    %309 = vst [vmem:[#allocation5 + $0x8] sm:$0xff] %v301
    %310 = vst [vmem:[#allocation5 + $0x10] sm:$0xff] %v302
    %311 = vst [vmem:[#allocation5 + $0x18] sm:$0xff] %v303
    %312 = vst [vmem:[#allocation5 + $0x20] sm:$0xff] %v304
    %313 = vst [vmem:[#allocation5 + $0x28] sm:$0xff] %v305
    %314 = vst [vmem:[#allocation5 + $0x30] sm:$0xff] %v306
    %315 = vst [vmem:[#allocation5 + $0x38] sm:$0xff] %v307
    %s316 = scalar_lea.vmem [#allocation2], 64
    %v317 = vld [vmem:[%s316] sm:$0xff]
    %v318 = vld [vmem:[%s316 + $0x8] sm:$0xff]
    %v319 = vld [vmem:[%s316 + $0x10] sm:$0xff]
    %v320 = vld [vmem:[%s316 + $0x18] sm:$0xff]
    %v321 = vld [vmem:[%s316 + $0x20] sm:$0xff]
    %v322 = vld [vmem:[%s316 + $0x28] sm:$0xff]
    %v323 = vld [vmem:[%s316 + $0x30] sm:$0xff]
    %v324 = vld [vmem:[%s316 + $0x38] sm:$0xff]
    %v325 = vmax.f32 %v317, %v318
    %326 = vmax.xlane.f32.xlu0 %v325
    %v327 = vpop.xlane.xlu0 %326
    %v328 = vmax.f32 %v319, %v320
    %329 = vmax.xlane.f32.xlu0 %v328
    %v330 = vpop.xlane.xlu0 %329
    %v331 = vmax.f32 %v321, %v322
    %332 = vmax.xlane.f32.xlu0 %v331
    %v333 = vpop.xlane.xlu0 %332
    %v334 = vmax.f32 %v323, %v324
    %335 = vmax.xlane.f32.xlu0 %v334
    %v336 = vpop.xlane.xlu0 %335
    %v337 = vadd.f32 %v317, %v318
    %338 = vadd.xlane.f32.xlu0 %v337
    %v339 = vpop.xlane.xlu0 %338
    %v340 = vadd.f32 %v319, %v320
    %341 = vadd.xlane.f32.xlu0 %v340
    %v342 = vpop.xlane.xlu0 %341
    %v343 = vadd.f32 %v321, %v322
    %344 = vadd.xlane.f32.xlu0 %v343
    %v345 = vpop.xlane.xlu0 %344
    %v346 = vadd.f32 %v323, %v324
    %347 = vadd.xlane.f32.xlu0 %v346
    %v348 = vpop.xlane.xlu0 %347
    %v349 = vmul.f32 %v339, 0.00390625
    %v350 = vmul.f32 %v342, 0.00390625
    %v351 = vmul.f32 %v345, 0.00390625
    %v352 = vmul.f32 %v348, 0.00390625
    %353 = vmatpush.msra.mxu0 0.0
    %354 = vmatpush.msra.mxu0 0.0
    %355 = vmatpush.msra.mxu0 0.0
    %356 = vmatpush.msra.mxu0 0.0
    %357 = vmatpush.msra.mxu0 0.0
    %358 = vmatpush.msra.mxu0 0.0
    %359 = vmatpush.msra.mxu0 0.0
    %360 = vmatpush.msra.mxu0 0.0
    %361 = vmatpush.msra.mxu0 0.0
    %362 = vmatpush.msra.mxu0 0.0
    %363 = vmatpush.msra.mxu0 0.0
    %364 = vmatpush.msra.mxu0 0.0
    %365 = vmatpush.msra.mxu0 %v336
    %366 = vmatpush.msra.mxu0 %v333
    %367 = vmatpush.msra.mxu0 %v330
    %368 = vmatpush.msra.mxu0 %v327
    %369 = vmatmul.f32.gmra.mxu0 %v85
    %v370 = vpop.f32.mrf.mxu0
    %v371 = vadd.f32 %v38, %v370
    %372 = vdwg.mxu0
    %v373 = vmax.f32 %v371, 0.0
    %374 = vmatpush.msra.mxu0 0.0
    %375 = vmatpush.msra.mxu0 0.0
    %376 = vmatpush.msra.mxu0 0.0
    %377 = vmatpush.msra.mxu0 0.0
    %378 = vmatpush.msra.mxu0 0.0
    %379 = vmatpush.msra.mxu0 0.0
    %380 = vmatpush.msra.mxu0 0.0
    %381 = vmatpush.msra.mxu0 0.0
    %382 = vmatpush.msra.mxu0 0.0
    %383 = vmatpush.msra.mxu0 0.0
    %384 = vmatpush.msra.mxu0 0.0
    %385 = vmatpush.msra.mxu0 0.0
    %386 = vmatpush.msra.mxu0 0.0
    %387 = vmatpush.msra.mxu0 0.0
    %388 = vmatpush.msra.mxu0 0.0
    %389 = vmatpush.msra.mxu0 %v373
    %390 = vmatmul.f32.gmra.mxu0 %v110
    %v391 = vpop.f32.mrf.mxu0
    %v392 = vadd.f32 %v43, %v391
    %393 = vmatmul.f32.gmra.mxu0 %v113
    %v394 = vpop.f32.mrf.mxu0
    %v395 = vadd.f32 %v44, %v394
    %396 = vmatmul.f32.gmra.mxu0 %v116
    %v397 = vpop.f32.mrf.mxu0
    %v398 = vadd.f32 %v45, %v397
    %399 = vmatmul.f32.gmra.mxu0 %v119
    %v400 = vpop.f32.mrf.mxu0
    %v401 = vadd.f32 %v46, %v400
    %402 = vdwg.mxu0
    %403 = vmatpush.msra.mxu0 0.0
    %404 = vmatpush.msra.mxu0 0.0
    %405 = vmatpush.msra.mxu0 0.0
    %406 = vmatpush.msra.mxu0 0.0
    %407 = vmatpush.msra.mxu0 0.0
    %408 = vmatpush.msra.mxu0 0.0
    %409 = vmatpush.msra.mxu0 0.0
    %410 = vmatpush.msra.mxu0 0.0
    %411 = vmatpush.msra.mxu0 0.0
    %412 = vmatpush.msra.mxu0 0.0
    %413 = vmatpush.msra.mxu0 0.0
    %414 = vmatpush.msra.mxu0 0.0
    %415 = vmatpush.msra.mxu0 %v352
    %416 = vmatpush.msra.mxu0 %v351
    %417 = vmatpush.msra.mxu0 %v350
    %418 = vmatpush.msra.mxu0 %v349
    %419 = vmatmul.f32.gmra.mxu0 %v85
    %v420 = vpop.f32.mrf.mxu0
    %v421 = vadd.f32 %v38, %v420
    %422 = vdwg.mxu0
    %v423 = vmax.f32 %v421, 0.0
    %424 = vmatpush.msra.mxu0 0.0
    %425 = vmatpush.msra.mxu0 0.0
    %426 = vmatpush.msra.mxu0 0.0
    %427 = vmatpush.msra.mxu0 0.0
    %428 = vmatpush.msra.mxu0 0.0
    %429 = vmatpush.msra.mxu0 0.0
    %430 = vmatpush.msra.mxu0 0.0
    %431 = vmatpush.msra.mxu0 0.0
    %432 = vmatpush.msra.mxu0 0.0
    %433 = vmatpush.msra.mxu0 0.0
    %434 = vmatpush.msra.mxu0 0.0
    %435 = vmatpush.msra.mxu0 0.0
    %436 = vmatpush.msra.mxu0 0.0
    %437 = vmatpush.msra.mxu0 0.0
    %438 = vmatpush.msra.mxu0 0.0
    %439 = vmatpush.msra.mxu0 %v423
    %440 = vmatmul.f32.gmra.mxu0 %v110
    %v441 = vpop.f32.mrf.mxu0
    %v442 = vadd.f32 %v43, %v441
    %443 = vmatmul.f32.gmra.mxu0 %v113
    %v444 = vpop.f32.mrf.mxu0
    %v445 = vadd.f32 %v44, %v444
    %446 = vmatmul.f32.gmra.mxu0 %v116
    %v447 = vpop.f32.mrf.mxu0
    %v448 = vadd.f32 %v45, %v447
    %449 = vmatmul.f32.gmra.mxu0 %v119
    %v450 = vpop.f32.mrf.mxu0
    %v451 = vadd.f32 %v46, %v450
    %452 = vdwg.mxu0
    %v453 = vadd.f32 %v392, %v442
    %v454 = vadd.f32 %v395, %v445
    %v455 = vadd.f32 %v398, %v448
    %v456 = vadd.f32 %v401, %v451
    %v457 = vsub.f32 0.0, %v453
    %v458 = vsub.f32 0.0, %v454
    %v459 = vsub.f32 0.0, %v455
    %v460 = vsub.f32 0.0, %v456
    %v461 = vmul.f32 %v457, 1.442695
    %v462 = vpow.pop %v461
    %v463 = vmul.f32 %v458, 1.442695
    %v464 = vpow.pop %v463
    %v465 = vmul.f32 %v459, 1.442695
    %v466 = vpow.pop %v465
    %v467 = vmul.f32 %v460, 1.442695
    %v468 = vpow.pop %v467
    %v469 = vadd.f32 %v462, 1.0
    %v470 = vadd.f32 %v464, 1.0
    %v471 = vadd.f32 %v466, 1.0
    %v472 = vadd.f32 %v468, 1.0
    %v473 = vrcp.pop %v469
    %v474 = vmul.f32 %v469, %v473
    %v475 = vsub.f32 1.0, %v474
    %v476 = vmul.f32 %v473, %v475
    %v477 = vadd.f32 %v473, %v476
    %vm478 = vweird.f32 %v469
    %vm479 = vweird.f32 %v473
    %vm480 = vmor %vm478, %vm479
    %v481 = vsel %vm480, %v473, %v477
    %v482 = vand.u32 2147483647, %v469
    %vm483 = vcmp.eq.f32.partialorder %v482, 8.507059e+37
    %v484 = vand.u32 %v469, 2147483648
    %v485 = vor.u32 1.1754944e-38, %v484
    %v486 = vsel %vm483, %v485, %v481
    %v487 = vmul.f32 1.0, %v486
    %v488 = vrcp.pop %v470
    %v489 = vmul.f32 %v470, %v488
    %v490 = vsub.f32 1.0, %v489
    %v491 = vmul.f32 %v488, %v490
    %v492 = vadd.f32 %v488, %v491
    %vm493 = vweird.f32 %v470
    %vm494 = vweird.f32 %v488
    %vm495 = vmor %vm493, %vm494
    %v496 = vsel %vm495, %v488, %v492
    %v497 = vand.u32 2147483647, %v470
    %vm498 = vcmp.eq.f32.partialorder %v497, 8.507059e+37
    %v499 = vand.u32 %v470, 2147483648
    %v500 = vor.u32 1.1754944e-38, %v499
    %v501 = vsel %vm498, %v500, %v496
    %v502 = vmul.f32 1.0, %v501
    %v503 = vrcp.pop %v471
    %v504 = vmul.f32 %v471, %v503
    %v505 = vsub.f32 1.0, %v504
    %v506 = vmul.f32 %v503, %v505
    %v507 = vadd.f32 %v503, %v506
    %vm508 = vweird.f32 %v471
    %vm509 = vweird.f32 %v503
    %vm510 = vmor %vm508, %vm509
    %v511 = vsel %vm510, %v503, %v507
    %v512 = vand.u32 2147483647, %v471
    %vm513 = vcmp.eq.f32.partialorder %v512, 8.507059e+37
    %v514 = vand.u32 %v471, 2147483648
    %v515 = vor.u32 1.1754944e-38, %v514
    %v516 = vsel %vm513, %v515, %v511
    %v517 = vmul.f32 1.0, %v516
    %v518 = vrcp.pop %v472
    %v519 = vmul.f32 %v472, %v518
    %v520 = vsub.f32 1.0, %v519
    %v521 = vmul.f32 %v518, %v520
    %v522 = vadd.f32 %v518, %v521
    %vm523 = vweird.f32 %v472
    %vm524 = vweird.f32 %v518
    %vm525 = vmor %vm523, %vm524
    %v526 = vsel %vm525, %v518, %v522
    %v527 = vand.u32 2147483647, %v472
    %vm528 = vcmp.eq.f32.partialorder %v527, 8.507059e+37
    %v529 = vand.u32 %v472, 2147483648
    %v530 = vor.u32 1.1754944e-38, %v529
    %v531 = vsel %vm528, %v530, %v526
    %v532 = vmul.f32 1.0, %v531
    %534 = vset.pattern.permute.xlu0 0
    %535 = vperm.xlu0 %534, %v487
    %v536 = vpop.permute.xlu0 %535
    %539 = vset.pattern.permute.xlu0 0
    %540 = vperm.xlu0 %539, %v502
    %v541 = vpop.permute.xlu0 %540
    %544 = vset.pattern.permute.xlu0 0
    %545 = vperm.xlu0 %544, %v517
    %v546 = vpop.permute.xlu0 %545
    %549 = vset.pattern.permute.xlu0 0
    %550 = vperm.xlu0 %549, %v532
    %v551 = vpop.permute.xlu0 %550
    %v553 = vmul.f32 %v317, %v536
    %v554 = vmul.f32 %v318, %v536
    %v555 = vmul.f32 %v319, %v541
    %v556 = vmul.f32 %v320, %v541
    %v557 = vmul.f32 %v321, %v546
    %v558 = vmul.f32 %v322, %v546
    %v559 = vmul.f32 %v323, %v551
    %v560 = vmul.f32 %v324, %v551
    %s561 = scalar_lea.vmem [#allocation5], 64
    %562 = vst [vmem:[%s561] sm:$0xff] %v553
    %563 = vst [vmem:[%s561 + $0x8] sm:$0xff] %v554
    %564 = vst [vmem:[%s561 + $0x10] sm:$0xff] %v555
    %565 = vst [vmem:[%s561 + $0x18] sm:$0xff] %v556
    %566 = vst [vmem:[%s561 + $0x20] sm:$0xff] %v557
    %567 = vst [vmem:[%s561 + $0x28] sm:$0xff] %v558
    %568 = vst [vmem:[%s561 + $0x30] sm:$0xff] %v559
    %569 = vst [vmem:[%s561 + $0x38] sm:$0xff] %v560
    // Predicated region
    $region26: #{tpu_custom_call.1} parent=1 // pred_check
      _
    $region27: #{tpu_custom_call.1} parent=1 // pred_check_branch
      %571 = sbr.rel (0) target = $region29
    $region28: #{tpu_custom_call.1} parent=1 // pred_region
      %573 = vsyncadd [#allocation4], 0
      %s574 = sshll.u32 [#allocation5], 4
      %s575 = int_to_ptr.vmem [resolvable:$true] %s574
      %s576 = sshll.u32 %s5, 4
      %s577 = int_to_ptr.hbm [resolvable:$true] %s576
      %582 = dma.vmem_to_hbm [thread:$0]  %s575, 2048, %s577, [#allocation4], 256, 256, 16
    $region29: #{tpu_custom_call.1} parent=1 // pred_fallthru
      _
    // Predicated region
    $region30: #{tpu_custom_call.1} parent=1 // pred_check
      _
    $region31: #{tpu_custom_call.1} parent=1 // pred_check_branch
      %584 = sbr.rel (0) target = $region33
    $region32: #{tpu_custom_call.1} parent=1 // pred_region
      %586 = dma.done [#allocation4], 2048
    $region33: #{tpu_custom_call.1} parent=1 // pred_fallthru
      _
    %587 = vsyncpa [#allocation3], 1
    %588 = vsyncpa [#allocation4], 1

</llo_original>
